<compile_context>
chip_gen: v7x
topology: tpu7x:2x2x1
jax: 0.10.0
libtpu: 0.0.40
codegen_flags: <defaults>
</compile_context>

<pallas_src>
import functools

import jax
import jax.numpy as jnp
from jax.experimental import pallas as pl
from jax.experimental.pallas import tpu as pltpu

LANE = 128
SUBLANE = 8


def _round_up(n, m):
    return (n + m - 1) // m * m


def gru_model_kernel(x_ref, h0_ref, w1_ref, b1_ref,
                     wih_ref, whh_ref, bih_ref, bhh_ref, out_ref, *,
                     hidden_size):
    H = hidden_size

    # hidden layer: relu(x @ W1 + b1)        (bf16 MXU, f32 accumulate, VPU epilogue)
    x = x_ref[...].astype(w1_ref.dtype)
    h = jnp.dot(x, w1_ref[...], preferred_element_type=jnp.float32)
    h = jnp.maximum(h + b1_ref[...], 0.0)

    # Single GRU-cell step (seq_len == 1 in the module's forward).
    # Gate pre-activations are packed on the lane axis: [ r | z | n | 0-pad ].
    h_prev = h0_ref[...]                                         # f32 (bt, H)
    gx = jnp.dot(h.astype(wih_ref.dtype), wih_ref[...],
                 preferred_element_type=jnp.float32) + bih_ref[...]
    gh = jnp.dot(h_prev.astype(whh_ref.dtype), whh_ref[...],
                 preferred_element_type=jnp.float32) + bhh_ref[...]

    r = jax.nn.sigmoid(gx[:, 0:H] + gh[:, 0:H])                  # EUP
    z = jax.nn.sigmoid(gx[:, H:2 * H] + gh[:, H:2 * H])
    n = jnp.tanh(gx[:, 2 * H:3 * H] + r * gh[:, 2 * H:3 * H])
    h_new = (1.0 - z) * n + z * h_prev

    out_ref[...] = h_new.astype(out_ref.dtype)


def prepare_params(w1, b1, w_ih, b_ih, w_hh, b_hh, in_size, hidden_size,
                   param_dtype=jnp.bfloat16):
    """Transpose PyTorch-layout weights, pack the 3 GRU gates into one
    128-lane slot, fold the r/z recurrent biases into the input-side bias,
    and store weights in bf16 (run once at parameter-load time).

    w1: (H, in)  b1: (H,)          -> w1p: (in, H) bf16, b1p: (1, H) f32
    w_ih/w_hh: (3H, H) gate order [r, z, n], b_*: (3H,)
                                   -> (H, GW) bf16 / (1, GW) f32, GW = rnd128(3H)
    """
    H = hidden_size
    GW = _round_up(3 * H, LANE)

    w1p = jnp.asarray(w1.T, param_dtype)                       # (in, H)
    b1p = jnp.asarray(b1, jnp.float32).reshape(1, H)

    def pack_gates(w):
        wp = jnp.zeros((H, GW), param_dtype)
        for g in range(3):
            wg = w[g * H:(g + 1) * H, :]                        # (H, H)
            wp = wp.at[:, g * H:(g + 1) * H].set(wg.T.astype(param_dtype))
        return wp

    wihp = pack_gates(w_ih)
    whhp = pack_gates(w_hh)

    b_ih = jnp.asarray(b_ih, jnp.float32)
    b_hh = jnp.asarray(b_hh, jnp.float32)
    bihp = jnp.zeros((1, GW), jnp.float32)
    bhhp = jnp.zeros((1, GW), jnp.float32)
    # r/z: bias_ih + bias_hh folded into the gx-side bias (one fewer real add).
    bihp = bihp.at[0, 0:H].set(b_ih[0:H] + b_hh[0:H])
    bihp = bihp.at[0, H:2 * H].set(b_ih[H:2 * H] + b_hh[H:2 * H])
    bihp = bihp.at[0, 2 * H:3 * H].set(b_ih[2 * H:3 * H])
    # n-gate hh bias must stay on the gh side (multiplied by r).
    bhhp = bhhp.at[0, 2 * H:3 * H].set(b_hh[2 * H:3 * H])
    return (w1p, b1p, wihp, whhp, bihp, bhhp)


def gru_model_forward(x, h_0, padded_params, hidden_size):
    """x: (B, in_size); h_0: None, (B, H) or (1, B, H).  Returns (output, h_n)."""
    w1p, b1p, wihp, whhp, bihp, bhhp = padded_params
    B, in_size = x.shape
    H = hidden_size
    GW = wihp.shape[1]

    if x.dtype != jnp.float32:
        x = x.astype(jnp.float32)
    if h_0 is None:
        h0 = jnp.zeros((B, H), jnp.float32)
    else:
        h0 = h_0.reshape(-1, H)
        if h0.dtype != jnp.float32:
            h0 = h0.astype(jnp.float32)

    # Batch tiling: a single full-array block for tiny B; otherwise >= 2 grid
    # steps (so both v7x TensorCores engage), capped at 256 rows per tile.
    if B <= SUBLANE:
        b_tile = B
    else:
        n_tiles = max(2, pl.cdiv(B, 256))
        b_tile = min(_round_up(pl.cdiv(B, n_tiles), SUBLANE), 256)
    b_pad = _round_up(B, b_tile)

    if b_pad != B:  # pad the batch dim only; no padded feature copies
        xp = jnp.pad(x, ((0, b_pad - B), (0, 0)))
        h0p = jnp.pad(h0, ((0, b_pad - B), (0, 0)))
    else:
        xp, h0p = x, h0

    grid = (b_pad // b_tile,)

    # Real (unpadded) work for the scheduler hint.
    flops = 2 * B * (in_size * H + 2 * H * 3 * H)
    transcendentals = 3 * B * H
    bytes_accessed = (4 * B * (in_size + 2 * H)
                      + sum(int(p.size) * p.dtype.itemsize for p in padded_params))

    h_new = pl.pallas_call(
        functools.partial(gru_model_kernel, hidden_size=H),
        out_shape=jax.ShapeDtypeStruct((b_pad, H), jnp.float32),
        grid=grid,
        in_specs=[
            pl.BlockSpec((b_tile, in_size), lambda b: (b, 0)),   # x tile (no pad)
            pl.BlockSpec((b_tile, H), lambda b: (b, 0)),         # h_0 tile
            pl.BlockSpec((in_size, H), lambda b: (0, 0)),        # W1 (resident)
            pl.BlockSpec((1, H), lambda b: (0, 0)),              # b1
            pl.BlockSpec((H, GW), lambda b: (0, 0)),             # W_ih packed gates
            pl.BlockSpec((H, GW), lambda b: (0, 0)),             # W_hh packed gates
            pl.BlockSpec((1, GW), lambda b: (0, 0)),             # b_ih (+ r/z b_hh)
            pl.BlockSpec((1, GW), lambda b: (0, 0)),             # b_hh (n gate only)
        ],
        out_specs=pl.BlockSpec((b_tile, H), lambda b: (b, 0)),
        compiler_params=pltpu.CompilerParams(
            dimension_semantics=("parallel",)),
        cost_estimate=pl.CostEstimate(
            flops=flops, transcendentals=transcendentals,
            bytes_accessed=bytes_accessed),
    )(xp, h0p, w1p, b1p, wihp, whhp, bihp, bhhp)

    if b_pad != B:
        h_new = h_new[:B]
    output = h_new[:, None, :]     # (B, 1, H): GRU sequence output (seq_len == 1)
    h_n = h_new[None, :, :]        # (1, B, H): final hidden state
    return output, h_n


if __name__ == "__main__":
    # Module defaults: hidden_size=40, num_layers=1.  Small demo shapes.
    B, in_size, hidden_size = 4, 32, 40

    key = jax.random.PRNGKey(0)
    kx, kh, k1, k2 = jax.random.split(key, 4)

    x = jax.random.normal(kx, (B, in_size), jnp.float32)
    h_0 = 0.1 * jax.random.normal(kh, (1, B, hidden_size), jnp.float32)

    # nn.Linear init: U(-1/sqrt(fan_in), 1/sqrt(fan_in)); PyTorch layout (out, in).
    def linear_init(k, fan_in, fan_out):
        kw, kb = jax.random.split(k)
        bound = 1.0 / jnp.sqrt(jnp.float32(fan_in))
        w = jax.random.uniform(kw, (fan_out, fan_in), jnp.float32, -bound, bound)
        b = jax.random.uniform(kb, (fan_out,), jnp.float32, -bound, bound)
        return w, b

    # nn.GRU(H, H) params: weight_ih_l0/weight_hh_l0 (3H, H), biases (3H,).
    def gru_init(k, hidden):
        ks = jax.random.split(k, 4)
        bound = 1.0 / jnp.sqrt(jnp.float32(hidden))
        w_ih = jax.random.uniform(ks[0], (3 * hidden, hidden), jnp.float32, -bound, bound)
        w_hh = jax.random.uniform(ks[1], (3 * hidden, hidden), jnp.float32, -bound, bound)
        b_ih = jax.random.uniform(ks[2], (3 * hidden,), jnp.float32, -bound, bound)
        b_hh = jax.random.uniform(ks[3], (3 * hidden,), jnp.float32, -bound, bound)
        return w_ih, w_hh, b_ih, b_hh

    w1, b1 = linear_init(k1, in_size, hidden_size)         # hidden_layers[0]
    w_ih, w_hh, b_ih, b_hh = gru_init(k2, hidden_size)     # self.gru (1 layer)

    padded = prepare_params(w1, b1, w_ih, b_ih, w_hh, b_hh, in_size, hidden_size)

    output, h_n = gru_model_forward(x, h_0, padded, hidden_size)
    output = jax.block_until_ready(output)
    h_n = jax.block_until_ready(h_n)

    # Pure-JAX f32 reference mirroring torch.nn.GRU equations (gate order r, z, n).
    H = hidden_size
    h = jnp.maximum(x @ w1.T + b1, 0.0)
    hp0 = h_0[0]
    gx = h @ w_ih.T + b_ih
    gh = hp0 @ w_hh.T + b_hh
    r = jax.nn.sigmoid(gx[:, :H] + gh[:, :H])
    z = jax.nn.sigmoid(gx[:, H:2 * H] + gh[:, H:2 * H])
    n = jnp.tanh(gx[:, 2 * H:] + r * gh[:, 2 * H:])
    h_ref = (1.0 - z) * n + z * hp0

    # bf16 weights + f32 accumulation: compare against the f32 reference with a
    # tolerance that comfortably covers bf16 rounding (observed error << 1e-2).
    assert jnp.allclose(h_n[0], h_ref, atol=3e-2, rtol=3e-2), "h_n mismatch vs reference"
    assert jnp.allclose(output[:, 0, :], h_ref, atol=3e-2, rtol=3e-2), "output mismatch vs reference"
    assert output.shape == (B, 1, hidden_size) and h_n.shape == (1, B, hidden_size)

    print("KERNEL_OK")
</pallas_src>

<mosaic_0001>
module attributes {stable_mosaic.version = 11 : i64} {
  func.func @gru_model_kernel(%arg0: i32, %arg1: memref<4x32xf32, #tpu.memory_space<vmem>>, %arg2: memref<4x40xf32, #tpu.memory_space<vmem>>, %arg3: memref<32x40xbf16, #tpu.memory_space<vmem>>, %arg4: memref<1x40xf32, #tpu.memory_space<vmem>>, %arg5: memref<40x128xbf16, #tpu.memory_space<vmem>>, %arg6: memref<40x128xbf16, #tpu.memory_space<vmem>>, %arg7: memref<1x128xf32, #tpu.memory_space<vmem>>, %arg8: memref<1x128xf32, #tpu.memory_space<vmem>>, %arg9: memref<4x40xf32, #tpu.memory_space<vmem>>) attributes {dimension_semantics = [#tpu.dimension_semantics<parallel>], iteration_bounds = array<i64: 1>, scalar_prefetch = 0 : i64, scratch_operands = 0 : i64, tpu.core_type = #tpu.core_type<tc>, window_params = [{transform_indices = @transform_0, window_bounds = array<i64: 4, 32>}, {transform_indices = @transform_1, window_bounds = array<i64: 4, 40>}, {pipeline_mode = #tpu.pipeline_mode<synchronous>, transform_indices = @transform_2, window_bounds = array<i64: 32, 40>}, {pipeline_mode = #tpu.pipeline_mode<synchronous>, transform_indices = @transform_3, window_bounds = array<i64: 1, 40>}, {pipeline_mode = #tpu.pipeline_mode<synchronous>, transform_indices = @transform_4, window_bounds = array<i64: 40, 128>}, {pipeline_mode = #tpu.pipeline_mode<synchronous>, transform_indices = @transform_5, window_bounds = array<i64: 40, 128>}, {pipeline_mode = #tpu.pipeline_mode<synchronous>, transform_indices = @transform_6, window_bounds = array<i64: 1, 128>}, {pipeline_mode = #tpu.pipeline_mode<synchronous>, transform_indices = @transform_7, window_bounds = array<i64: 1, 128>}, {transform_indices = @transform_8, window_bounds = array<i64: 4, 40>}]} {
    %c0 = arith.constant 0 : index
    %c0_0 = arith.constant 0 : index
    %0 = vector.load %arg1[%c0, %c0_0] : memref<4x32xf32, #tpu.memory_space<vmem>>, vector<4x32xf32>
    %1 = arith.truncf %0 : vector<4x32xf32> to vector<4x32xbf16>
    %c0_1 = arith.constant 0 : index
    %c0_2 = arith.constant 0 : index
    %2 = vector.load %arg3[%c0_1, %c0_2] : memref<32x40xbf16, #tpu.memory_space<vmem>>, vector<32x40xbf16>
    %cst = arith.constant dense<0.000000e+00> : vector<4x40xf32>
    %3 = tpu.matmul %1, %2, %cst {dimension_numbers = #tpu.dot_dimension_numbers<[1], [0], [0], [1], [0, 0, 1, 1], [], []>} : vector<4x32xbf16>, vector<32x40xbf16>, vector<4x40xf32> -> vector<4x40xf32>
    %c0_3 = arith.constant 0 : index
    %c0_4 = arith.constant 0 : index
    %4 = vector.load %arg4[%c0_3, %c0_4] : memref<1x40xf32, #tpu.memory_space<vmem>>, vector<1x40xf32>
    %5 = vector.broadcast %4 : vector<1x40xf32> to vector<4x40xf32>
    %6 = arith.addf %3, %5 : vector<4x40xf32>
    %cst_5 = arith.constant 0.000000e+00 : f32
    %7 = vector.broadcast %cst_5 : f32 to vector<4x40xf32>
    %8 = arith.maximumf %6, %7 : vector<4x40xf32>
    %c0_6 = arith.constant 0 : index
    %c0_7 = arith.constant 0 : index
    %9 = vector.load %arg2[%c0_6, %c0_7] : memref<4x40xf32, #tpu.memory_space<vmem>>, vector<4x40xf32>
    %10 = arith.truncf %8 : vector<4x40xf32> to vector<4x40xbf16>
    %c0_8 = arith.constant 0 : index
    %c0_9 = arith.constant 0 : index
    %11 = vector.load %arg5[%c0_8, %c0_9] : memref<40x128xbf16, #tpu.memory_space<vmem>>, vector<40x128xbf16>
    %cst_10 = arith.constant dense<0.000000e+00> : vector<4x128xf32>
    %12 = tpu.matmul %10, %11, %cst_10 {dimension_numbers = #tpu.dot_dimension_numbers<[1], [0], [0], [1], [0, 0, 1, 1], [], []>} : vector<4x40xbf16>, vector<40x128xbf16>, vector<4x128xf32> -> vector<4x128xf32>
    %c0_11 = arith.constant 0 : index
    %c0_12 = arith.constant 0 : index
    %13 = vector.load %arg7[%c0_11, %c0_12] : memref<1x128xf32, #tpu.memory_space<vmem>>, vector<1x128xf32>
    %14 = vector.broadcast %13 : vector<1x128xf32> to vector<4x128xf32>
    %15 = arith.addf %12, %14 : vector<4x128xf32>
    %16 = arith.truncf %9 : vector<4x40xf32> to vector<4x40xbf16>
    %c0_13 = arith.constant 0 : index
    %c0_14 = arith.constant 0 : index
    %17 = vector.load %arg6[%c0_13, %c0_14] : memref<40x128xbf16, #tpu.memory_space<vmem>>, vector<40x128xbf16>
    %cst_15 = arith.constant dense<0.000000e+00> : vector<4x128xf32>
    %18 = tpu.matmul %16, %17, %cst_15 {dimension_numbers = #tpu.dot_dimension_numbers<[1], [0], [0], [1], [0, 0, 1, 1], [], []>} : vector<4x40xbf16>, vector<40x128xbf16>, vector<4x128xf32> -> vector<4x128xf32>
    %c0_16 = arith.constant 0 : index
    %c0_17 = arith.constant 0 : index
    %19 = vector.load %arg8[%c0_16, %c0_17] : memref<1x128xf32, #tpu.memory_space<vmem>>, vector<1x128xf32>
    %20 = vector.broadcast %19 : vector<1x128xf32> to vector<4x128xf32>
    %21 = arith.addf %18, %20 : vector<4x128xf32>
    %22 = vector.extract_strided_slice %15 {offsets = [0, 0], sizes = [4, 40], strides = [1, 1]} : vector<4x128xf32> to vector<4x40xf32>
    %23 = vector.extract_strided_slice %21 {offsets = [0, 0], sizes = [4, 40], strides = [1, 1]} : vector<4x128xf32> to vector<4x40xf32>
    %24 = arith.addf %22, %23 : vector<4x40xf32>
    %25 = arith.negf %24 : vector<4x40xf32>
    %26 = math.exp %25 : vector<4x40xf32>
    %cst_18 = arith.constant 1.000000e+00 : f32
    %27 = vector.broadcast %cst_18 : f32 to vector<4x40xf32>
    %28 = arith.addf %27, %26 : vector<4x40xf32>
    %29 = arith.divf %27, %28 : vector<4x40xf32>
    %30 = vector.extract_strided_slice %15 {offsets = [0, 40], sizes = [4, 40], strides = [1, 1]} : vector<4x128xf32> to vector<4x40xf32>
    %31 = vector.extract_strided_slice %21 {offsets = [0, 40], sizes = [4, 40], strides = [1, 1]} : vector<4x128xf32> to vector<4x40xf32>
    %32 = arith.addf %30, %31 : vector<4x40xf32>
    %33 = arith.negf %32 : vector<4x40xf32>
    %34 = math.exp %33 : vector<4x40xf32>
    %cst_19 = arith.constant 1.000000e+00 : f32
    %35 = vector.broadcast %cst_19 : f32 to vector<4x40xf32>
    %36 = arith.addf %35, %34 : vector<4x40xf32>
    %37 = arith.divf %35, %36 : vector<4x40xf32>
    %38 = vector.extract_strided_slice %15 {offsets = [0, 80], sizes = [4, 40], strides = [1, 1]} : vector<4x128xf32> to vector<4x40xf32>
    %39 = vector.extract_strided_slice %21 {offsets = [0, 80], sizes = [4, 40], strides = [1, 1]} : vector<4x128xf32> to vector<4x40xf32>
    %40 = arith.mulf %29, %39 : vector<4x40xf32>
    %41 = arith.addf %38, %40 : vector<4x40xf32>
    %42 = math.tanh %41 : vector<4x40xf32>
    %cst_20 = arith.constant 1.000000e+00 : f32
    %43 = vector.broadcast %cst_20 : f32 to vector<4x40xf32>
    %44 = arith.subf %43, %37 : vector<4x40xf32>
    %45 = arith.mulf %44, %42 : vector<4x40xf32>
    %46 = arith.mulf %37, %9 : vector<4x40xf32>
    %47 = arith.addf %45, %46 : vector<4x40xf32>
    %c0_21 = arith.constant 0 : index
    %c0_22 = arith.constant 0 : index
    %48 = vector.load %arg9[%c0_21, %c0_22] : memref<4x40xf32, #tpu.memory_space<vmem>>, vector<4x40xf32>
    tpu.vector_store %arg9[%c0_21, %c0_22], %47 {strides = array<i32>} : memref<4x40xf32, #tpu.memory_space<vmem>>, vector<4x40xf32>,
    return
  }
  func.func @transform_0(%arg0: i32) -> (i32, i32) {
    %c0_i32 = arith.constant 0 : i32
    %c0_i32_0 = arith.constant 0 : i32
    return %arg0, %c0_i32 : i32, i32
  }
  func.func @transform_1(%arg0: i32) -> (i32, i32) {
    %c0_i32 = arith.constant 0 : i32
    %c0_i32_0 = arith.constant 0 : i32
    return %arg0, %c0_i32 : i32, i32
  }
  func.func @transform_2(%arg0: i32) -> (i32, i32) {
    %c0_i32 = arith.constant 0 : i32
    %c0_i32_0 = arith.constant 0 : i32
    %c0_i32_1 = arith.constant 0 : i32
    return %c0_i32, %c0_i32_0 : i32, i32
  }
  func.func @transform_3(%arg0: i32) -> (i32, i32) {
    %c0_i32 = arith.constant 0 : i32
    %c0_i32_0 = arith.constant 0 : i32
    %c0_i32_1 = arith.constant 0 : i32
    return %c0_i32, %c0_i32_0 : i32, i32
  }
  func.func @transform_4(%arg0: i32) -> (i32, i32) {
    %c0_i32 = arith.constant 0 : i32
    %c0_i32_0 = arith.constant 0 : i32
    %c0_i32_1 = arith.constant 0 : i32
    return %c0_i32, %c0_i32_0 : i32, i32
  }
  func.func @transform_5(%arg0: i32) -> (i32, i32) {
    %c0_i32 = arith.constant 0 : i32
    %c0_i32_0 = arith.constant 0 : i32
    %c0_i32_1 = arith.constant 0 : i32
    return %c0_i32, %c0_i32_0 : i32, i32
  }
  func.func @transform_6(%arg0: i32) -> (i32, i32) {
    %c0_i32 = arith.constant 0 : i32
    %c0_i32_0 = arith.constant 0 : i32
    %c0_i32_1 = arith.constant 0 : i32
    return %c0_i32, %c0_i32_0 : i32, i32
  }
  func.func @transform_7(%arg0: i32) -> (i32, i32) {
    %c0_i32 = arith.constant 0 : i32
    %c0_i32_0 = arith.constant 0 : i32
    %c0_i32_1 = arith.constant 0 : i32
    return %c0_i32, %c0_i32_0 : i32, i32
  }
  func.func @transform_8(%arg0: i32) -> (i32, i32) {
    %c0_i32 = arith.constant 0 : i32
    %c0_i32_0 = arith.constant 0 : i32
    return %arg0, %c0_i32 : i32, i32
  }
}

</mosaic_0001>

<llo_original>
// kernel: tpu_custom_call.1
$region0: #{tpu_custom_call.1}
  #allocation0 [shape = 'u32[]', space=smem, size = 0x4, offset = 0x4, fixed_abs, tag = 'smem constant byte address 0x4 - core index']
  #allocation1 [shape = 'u32[144,128]{1,0:T(1,128)}', space=vmem, size = 0x12000, scoped, tag = 'internal scratch']
  %s0 = inlined_call_operand.hbm [shape: f32[4,32], index: 0, kind: input, shape index: {}]
  %s1 = inlined_call_operand.hbm [shape: f32[4,40], index: 1, kind: input, shape index: {}]
  %s2 = inlined_call_operand.hbm [shape: bf16[32,40], index: 2, kind: input, shape index: {}]
  %s3 = inlined_call_operand.vmem [shape: f32[1,40], index: 3, kind: input, shape index: {}]
  %s4 = inlined_call_operand.hbm [shape: bf16[40,128], index: 4, kind: input, shape index: {}]
  %s5 = inlined_call_operand.hbm [shape: bf16[40,128], index: 5, kind: input, shape index: {}]
  %s6 = inlined_call_operand.vmem [shape: f32[1,128], index: 6, kind: input, shape index: {}]
  %s7 = inlined_call_operand.vmem [shape: f32[1,128], index: 7, kind: input, shape index: {}]
  %s8 = inlined_call_operand.hbm [shape: f32[4,40], index: 8, kind: output, shape index: {}]
  %s9 = sld [smem:[#allocation0]]
  $region62: #{tpu_custom_call.1} parent=0
    _
  %s11 = ssub.s32 1, %s9
  %s12 = scalar_select 0, %s11, %s9
  $region1: #{tpu_custom_call.1} parent=0
    #allocation2 [shape = 'u8[2048]{0}', space=vmem, size = 0x800, scoped, tag = 'input window, operand 0, single buffered']
    #allocation3 [shape = 's32[1]{0}', space=sflag, size = 0x4, scoped, tag = 'scoped memory for tpu_custom_call.1']
    #allocation4 [shape = 's32[1]{0}', space=sflag, size = 0x4, scoped, tag = 'scoped memory for tpu_custom_call.1']
    #allocation5 [shape = 'u8[2048]{0}', space=vmem, size = 0x800, scoped, tag = 'input window, operand 1, single buffered']
    #allocation6 [shape = 's32[1]{0}', space=sflag, size = 0x4, scoped, tag = 'scoped memory for tpu_custom_call.1']
    #allocation7 [shape = 'u8[8192]{0}', space=vmem, size = 0x2000, scoped, tag = 'input window, operand 2, single buffered']
    #allocation8 [shape = 'u8[10240]{0}', space=vmem, size = 0x2800, scoped, tag = 'input window, operand 4, single buffered']
    #allocation9 [shape = 's32[1]{0}', space=sflag, size = 0x4, scoped, tag = 'scoped memory for tpu_custom_call.1']
    #allocation10 [shape = 'u8[10240]{0}', space=vmem, size = 0x2800, scoped, tag = 'input window, operand 5, single buffered']
    #allocation11 [shape = 'u8[2048]{0}', space=vmem, size = 0x800, scoped, tag = 'output window, operand 0, single buffered']
    %13 = vsyncpa [#allocation3], 0
    %14 = vsyncpa [#allocation6], 0
    %15 = vsyncpa [#allocation9], 0
    %16 = vsyncpa [#allocation4], 0
    // Predicated region
    $region2: #{tpu_custom_call.1} parent=1 // pred_check
      _
    $region3: #{tpu_custom_call.1} parent=1 // pred_check_branch
      %18 = sbr.rel (0) target = $region5
    $region4: #{tpu_custom_call.1} parent=1 // pred_region
      %s20 = ssub.s32 64, 64
      %21 = vsyncadd [#allocation3], %s20
      %s23 = sshll.u32 [#allocation2], 4
      %s24 = int_to_ptr.vmem [resolvable:$true] %s23
      %26 = dma.hbm_to_vmem [thread:$0]  %s0, 64, %s24, [#allocation3]
    $region5: #{tpu_custom_call.1} parent=1 // pred_fallthru
      _
    // Predicated region
    $region6: #{tpu_custom_call.1} parent=1 // pred_check
      _
    $region7: #{tpu_custom_call.1} parent=1 // pred_check_branch
      %28 = sbr.rel (0) target = $region9
    $region8: #{tpu_custom_call.1} parent=1 // pred_region
      %s30 = ssub.s32 64, 64
      %31 = vsyncadd [#allocation6], %s30
      %s33 = sshll.u32 [#allocation5], 4
      %s34 = int_to_ptr.vmem [resolvable:$true] %s33
      %36 = dma.hbm_to_vmem [thread:$0]  %s1, 64, %s34, [#allocation6]
    $region9: #{tpu_custom_call.1} parent=1 // pred_fallthru
      _
    // Predicated region
    $region10: #{tpu_custom_call.1} parent=1 // pred_check
      _
    $region11: #{tpu_custom_call.1} parent=1 // pred_check_branch
      %38 = sbr.rel (0) target = $region13
    $region12: #{tpu_custom_call.1} parent=1 // pred_region
      %s40 = ssub.s32 256, 256
      %41 = vsyncadd [#allocation6], %s40
      %s42 = sshll.u32 [#allocation7], 4
      %s43 = int_to_ptr.vmem [resolvable:$true] %s42
      %48 = dma.hbm_to_vmem [thread:$0]  %s2, 256, %s43, [#allocation6], 64, 64, 4
    $region13: #{tpu_custom_call.1} parent=1 // pred_fallthru
      _
    // Predicated region
    $region14: #{tpu_custom_call.1} parent=1 // pred_check
      _
    $region15: #{tpu_custom_call.1} parent=1 // pred_check_branch
      %50 = sbr.rel (0) target = $region17
    $region16: #{tpu_custom_call.1} parent=1 // pred_region
      _
    $region17: #{tpu_custom_call.1} parent=1 // pred_fallthru
      _
    // Predicated region
    $region18: #{tpu_custom_call.1} parent=1 // pred_check
      _
    $region19: #{tpu_custom_call.1} parent=1 // pred_check_branch
      %52 = sbr.rel (0) target = $region21
    $region20: #{tpu_custom_call.1} parent=1 // pred_region
      %s54 = ssub.s32 320, 320
      %55 = vsyncadd [#allocation9], %s54
      %s56 = sshll.u32 [#allocation8], 4
      %s57 = int_to_ptr.vmem [resolvable:$true] %s56
      %62 = dma.hbm_to_vmem [thread:$0]  %s4, 320, %s57, [#allocation9], 64, 64, 4
    $region21: #{tpu_custom_call.1} parent=1 // pred_fallthru
      _
    // Predicated region
    $region22: #{tpu_custom_call.1} parent=1 // pred_check
      _
    $region23: #{tpu_custom_call.1} parent=1 // pred_check_branch
      %64 = sbr.rel (0) target = $region25
    $region24: #{tpu_custom_call.1} parent=1 // pred_region
      %s66 = ssub.s32 320, 320
      %67 = vsyncadd [#allocation9], %s66
      %s68 = sshll.u32 [#allocation10], 4
      %s69 = int_to_ptr.vmem [resolvable:$true] %s68
      %74 = dma.hbm_to_vmem [thread:$0]  %s5, 320, %s69, [#allocation9], 64, 64, 4
    $region25: #{tpu_custom_call.1} parent=1 // pred_fallthru
      _
    // Predicated region
    $region26: #{tpu_custom_call.1} parent=1 // pred_check
      _
    $region27: #{tpu_custom_call.1} parent=1 // pred_check_branch
      %76 = sbr.rel (0) target = $region29
    $region28: #{tpu_custom_call.1} parent=1 // pred_region
      _
    $region29: #{tpu_custom_call.1} parent=1 // pred_fallthru
      _
    // Predicated region
    $region30: #{tpu_custom_call.1} parent=1 // pred_check
      _
    $region31: #{tpu_custom_call.1} parent=1 // pred_check_branch
      %78 = sbr.rel (0) target = $region33
    $region32: #{tpu_custom_call.1} parent=1 // pred_region
      _
    $region33: #{tpu_custom_call.1} parent=1 // pred_fallthru
      _
    // Predicated region
    $region34: #{tpu_custom_call.1} parent=1 // pred_check
      _
    $region35: #{tpu_custom_call.1} parent=1 // pred_check_branch
      %80 = sbr.rel (0) target = $region37
    $region36: #{tpu_custom_call.1} parent=1 // pred_region
      %81 = dma.done [#allocation3], 64
    $region37: #{tpu_custom_call.1} parent=1 // pred_fallthru
      _
    // Predicated region
    $region38: #{tpu_custom_call.1} parent=1 // pred_check
      _
    $region39: #{tpu_custom_call.1} parent=1 // pred_check_branch
      %83 = sbr.rel (0) target = $region41
    $region40: #{tpu_custom_call.1} parent=1 // pred_region
      %84 = dma.done [#allocation6], 64
    $region41: #{tpu_custom_call.1} parent=1 // pred_fallthru
      _
    // Predicated region
    $region42: #{tpu_custom_call.1} parent=1 // pred_check
      _
    $region43: #{tpu_custom_call.1} parent=1 // pred_check_branch
      %86 = sbr.rel (0) target = $region45
    $region44: #{tpu_custom_call.1} parent=1 // pred_region
      %87 = dma.done [#allocation6], 256
    $region45: #{tpu_custom_call.1} parent=1 // pred_fallthru
      _
    // Predicated region
    $region46: #{tpu_custom_call.1} parent=1 // pred_check
      _
    $region47: #{tpu_custom_call.1} parent=1 // pred_check_branch
      %89 = sbr.rel (0) target = $region49
    $region48: #{tpu_custom_call.1} parent=1 // pred_region
      %90 = dma.done [#allocation9], 320
    $region49: #{tpu_custom_call.1} parent=1 // pred_fallthru
      _
    // Predicated region
    $region50: #{tpu_custom_call.1} parent=1 // pred_check
      _
    $region51: #{tpu_custom_call.1} parent=1 // pred_check_branch
      %92 = sbr.rel (0) target = $region53
    $region52: #{tpu_custom_call.1} parent=1 // pred_region
      %93 = dma.done [#allocation9], 320
    $region53: #{tpu_custom_call.1} parent=1 // pred_fallthru
      _
    %v95 = vld [vmem:[#allocation2] sm:$0xf]
    %v96 = vpack.c.bf16 %v95, %v95
    %v97 = vld [vmem:[#allocation7] sm:$0xf]
    %v98 = vld [vmem:[#allocation7 + $0x4] sm:$0xf]
    %v99 = vld [vmem:[#allocation7 + $0x8] sm:$0xf]
    %v100 = vld [vmem:[#allocation7 + $0xc] sm:$0xf]
    %v101 = vld [vmem:[%s3] sm:$0x1]
    %v103 = vlaneseq
    %v104 = vshrl.u32 %v103, 7
    %v105 = vsub.s32 0, %v104
    %v106 = vrot.slane %v101, %v105
    %v112 = vunpack.c.l.b16 %v97
    %v113 = vunpack.c.l.b16 %v98
    %v114 = vunpack.c.l.b16 %v99
    %v115 = vunpack.c.l.b16 %v100
    %v116 = vpack.c.b16 %v113, %v112
    %v117 = vpack.c.b16 %v115, %v114
    %vm120 = vcmask 261120
    %v122 = vsel %vm120, %v96, 0
    %124 = vmatprep.subr.bf16.mxu0 0
    %125 = vmatpush1.bf16.msra.mxu0 %v116
    %126 = vmatprep.subr.bf16.mxu0 0
    %127 = vmatpush1.bf16.msra.mxu0 %v117
    %128 = vmatprep.subr.bf16.mxu0 0
    %129 = vmatpush1.bf16.msra.mxu0 0
    %130 = vmatprep.subr.bf16.mxu0 0
    %131 = vmatpush1.bf16.msra.mxu0 0
    %132 = vmatprep.subr.bf16.mxu0 0
    %133 = vmatpush1.bf16.msra.mxu0 0
    %134 = vmatprep.subr.bf16.mxu0 0
    %135 = vmatpush1.bf16.msra.mxu0 0
    %136 = vmatprep.subr.bf16.mxu0 0
    %137 = vmatpush1.bf16.msra.mxu0 0
    %138 = vmatprep.subr.bf16.mxu0 0
    %139 = vmatpush1.bf16.msra.mxu0 0
    %140 = vmatprep.subr.bf16.mxu0 0
    %141 = vmatpush1.bf16.msra.mxu0 0
    %142 = vmatprep.subr.bf16.mxu0 0
    %143 = vmatpush1.bf16.msra.mxu0 0
    %144 = vmatprep.subr.bf16.mxu0 0
    %145 = vmatpush1.bf16.msra.mxu0 0
    %146 = vmatprep.subr.bf16.mxu0 0
    %147 = vmatpush1.bf16.msra.mxu0 0
    %148 = vmatprep.subr.bf16.mxu0 0
    %149 = vmatpush1.bf16.msra.mxu0 0
    %150 = vmatprep.subr.bf16.mxu0 0
    %151 = vmatpush1.bf16.msra.mxu0 0
    %152 = vmatprep.subr.bf16.mxu0 0
    %153 = vmatpush1.bf16.msra.mxu0 0
    %154 = vmatprep.subr.bf16.mxu0 0
    %155 = vmatpush1.bf16.msra.mxu0 0
    %156 = vmatprep.mubr.bf16.mxu0 0
    %157 = vmatmul.mubr.bf16.gmra.mrb[0].mxu0 %v122
    %v158 = vpop.f32.mrb[0].mxu0
    %v159 = vadd.f32 %v106, %v158
    %v160 = vpop.f32.mrb[0].mxu0
    %v161 = vpop.f32.mrb[0].mxu0
    %v162 = vpop.f32.mrb[0].mxu0
    %163 = vdwg.mxu0
    %v164 = vmax.f32 %v159, 0.0
    %v165 = vld [vmem:[#allocation5] sm:$0xf]
    %v166 = vpack.c.bf16 %v164, %v164
    %v167 = vld [vmem:[#allocation8] sm:$0xf]
    %v168 = vld [vmem:[#allocation8 + $0x4] sm:$0xf]
    %v169 = vld [vmem:[#allocation8 + $0x8] sm:$0xf]
    %v170 = vld [vmem:[#allocation8 + $0xc] sm:$0xf]
    %v171 = vld [vmem:[#allocation8 + $0x10] sm:$0xf]
    %v172 = vld [vmem:[%s6] sm:$0x1]
    %v174 = vlaneseq
    %v175 = vshrl.u32 %v174, 7
    %v176 = vsub.s32 0, %v175
    %v177 = vrot.slane %v172, %v176
    %v184 = vunpack.c.l.b16 %v167
    %v185 = vunpack.c.l.b16 %v168
    %v186 = vunpack.c.l.b16 %v169
    %v187 = vunpack.c.l.b16 %v170
    %v188 = vunpack.c.l.b16 %v171
    %v189 = vpack.c.b16 %v185, %v184
    %v190 = vpack.c.b16 %v187, %v186
    %v191 = vpack.c.b16 %v188, %v188
    %vm194 = vcmask 326656
    %v196 = vsel %vm194, %v166, 0
    %vm198 = vcmask 1043456
    %v200 = vsel %vm198, %v191, 0
    %202 = vmatprep.subr.bf16.mxu0 0
    %203 = vmatpush1.bf16.msra.mxu0 %v189
    %204 = vmatprep.subr.bf16.mxu0 0
    %205 = vmatpush1.bf16.msra.mxu0 %v190
    %206 = vmatprep.subr.bf16.mxu0 0
    %207 = vmatpush1.bf16.msra.mxu0 %v200
    %208 = vmatprep.subr.bf16.mxu0 0
    %209 = vmatpush1.bf16.msra.mxu0 0
    %210 = vmatprep.subr.bf16.mxu0 0
    %211 = vmatpush1.bf16.msra.mxu0 0
    %212 = vmatprep.subr.bf16.mxu0 0
    %213 = vmatpush1.bf16.msra.mxu0 0
    %214 = vmatprep.subr.bf16.mxu0 0
    %215 = vmatpush1.bf16.msra.mxu0 0
    %216 = vmatprep.subr.bf16.mxu0 0
    %217 = vmatpush1.bf16.msra.mxu0 0
    %218 = vmatprep.subr.bf16.mxu0 0
    %219 = vmatpush1.bf16.msra.mxu0 0
    %220 = vmatprep.subr.bf16.mxu0 0
    %221 = vmatpush1.bf16.msra.mxu0 0
    %222 = vmatprep.subr.bf16.mxu0 0
    %223 = vmatpush1.bf16.msra.mxu0 0
    %224 = vmatprep.subr.bf16.mxu0 0
    %225 = vmatpush1.bf16.msra.mxu0 0
    %226 = vmatprep.subr.bf16.mxu0 0
    %227 = vmatpush1.bf16.msra.mxu0 0
    %228 = vmatprep.subr.bf16.mxu0 0
    %229 = vmatpush1.bf16.msra.mxu0 0
    %230 = vmatprep.subr.bf16.mxu0 0
    %231 = vmatpush1.bf16.msra.mxu0 0
    %232 = vmatprep.subr.bf16.mxu0 0
    %233 = vmatpush1.bf16.msra.mxu0 0
    %234 = vmatprep.mubr.bf16.mxu0 0
    %235 = vmatmul.mubr.bf16.gmra.mrb[0].mxu0 %v196
    %v236 = vpop.f32.mrb[0].mxu0
    %v237 = vadd.f32 %v177, %v236
    %v238 = vpop.f32.mrb[0].mxu0
    %v239 = vpop.f32.mrb[0].mxu0
    %v240 = vpop.f32.mrb[0].mxu0
    %241 = vdwg.mxu0
    %v242 = vpack.c.bf16 %v165, %v165
    %v243 = vld [vmem:[#allocation10] sm:$0xf]
    %v244 = vld [vmem:[#allocation10 + $0x4] sm:$0xf]
    %v245 = vld [vmem:[#allocation10 + $0x8] sm:$0xf]
    %v246 = vld [vmem:[#allocation10 + $0xc] sm:$0xf]
    %v247 = vld [vmem:[#allocation10 + $0x10] sm:$0xf]
    %v248 = vld [vmem:[%s7] sm:$0x1]
    %v250 = vlaneseq
    %v251 = vshrl.u32 %v250, 7
    %v252 = vsub.s32 0, %v251
    %v253 = vrot.slane %v248, %v252
    %v260 = vunpack.c.l.b16 %v243
    %v261 = vunpack.c.l.b16 %v244
    %v262 = vunpack.c.l.b16 %v245
    %v263 = vunpack.c.l.b16 %v246
    %v264 = vunpack.c.l.b16 %v247
    %v265 = vpack.c.b16 %v261, %v260
    %v266 = vpack.c.b16 %v263, %v262
    %v267 = vpack.c.b16 %v264, %v264
    %v271 = vsel %vm194, %v242, 0
    %v274 = vsel %vm198, %v267, 0
    %276 = vmatprep.subr.bf16.mxu0 0
    %277 = vmatpush1.bf16.msra.mxu0 %v265
    %278 = vmatprep.subr.bf16.mxu0 0
    %279 = vmatpush1.bf16.msra.mxu0 %v266
    %280 = vmatprep.subr.bf16.mxu0 0
    %281 = vmatpush1.bf16.msra.mxu0 %v274
    %282 = vmatprep.subr.bf16.mxu0 0
    %283 = vmatpush1.bf16.msra.mxu0 0
    %284 = vmatprep.subr.bf16.mxu0 0
    %285 = vmatpush1.bf16.msra.mxu0 0
    %286 = vmatprep.subr.bf16.mxu0 0
    %287 = vmatpush1.bf16.msra.mxu0 0
    %288 = vmatprep.subr.bf16.mxu0 0
    %289 = vmatpush1.bf16.msra.mxu0 0
    %290 = vmatprep.subr.bf16.mxu0 0
    %291 = vmatpush1.bf16.msra.mxu0 0
    %292 = vmatprep.subr.bf16.mxu0 0
    %293 = vmatpush1.bf16.msra.mxu0 0
    %294 = vmatprep.subr.bf16.mxu0 0
    %295 = vmatpush1.bf16.msra.mxu0 0
    %296 = vmatprep.subr.bf16.mxu0 0
    %297 = vmatpush1.bf16.msra.mxu0 0
    %298 = vmatprep.subr.bf16.mxu0 0
    %299 = vmatpush1.bf16.msra.mxu0 0
    %300 = vmatprep.subr.bf16.mxu0 0
    %301 = vmatpush1.bf16.msra.mxu0 0
    %302 = vmatprep.subr.bf16.mxu0 0
    %303 = vmatpush1.bf16.msra.mxu0 0
    %304 = vmatprep.subr.bf16.mxu0 0
    %305 = vmatpush1.bf16.msra.mxu0 0
    %306 = vmatprep.subr.bf16.mxu0 0
    %307 = vmatpush1.bf16.msra.mxu0 0
    %308 = vmatprep.mubr.bf16.mxu0 0
    %309 = vmatmul.mubr.bf16.gmra.mrb[0].mxu0 %v271
    %v310 = vpop.f32.mrb[0].mxu0
    %v311 = vadd.f32 %v253, %v310
    %v312 = vpop.f32.mrb[0].mxu0
    %v313 = vpop.f32.mrb[0].mxu0
    %v314 = vpop.f32.mrb[0].mxu0
    %315 = vdwg.mxu0
    %v316 = vadd.f32 %v237, %v311
    %v317 = vxor.u32 %v316, 2147483648
    %v318 = vmul.f32 %v317, 1.442695
    %v319 = vpow.pop %v318
    %v320 = vadd.f32 %v319, 1.0
    %v321 = vrcp.pop %v320
    %v322 = vmul.f32 1.0, %v321
    %324 = vrot.lane.b32.xlu0 %v311, 48
    %v325 = vpop.permute.xlu0 %324
    %v327 = vmul.f32 %v322, %v325
    %329 = vrot.lane.b32.xlu0 %v327, 80
    %v330 = vpop.permute.xlu0 %329
    %v332 = vadd.f32 %v237, %v330
    %v333 = vtanh.pop %v332
    %v334 = vsub.f32 1.0, %v322
    %336 = vrot.lane.b32.xlu0 %v333, 88
    %v337 = vpop.permute.xlu0 %336
    %v339 = vmul.f32 %v334, %v337
    %341 = vrot.lane.b32.xlu0 %v165, 40
    %v342 = vpop.permute.xlu0 %341
    %v344 = vmul.f32 %v322, %v342
    %v345 = vadd.f32 %v339, %v344
    %347 = vrot.lane.b32.xlu0 %v345, 88
    %v348 = vpop.permute.xlu0 %347
    %vm350 = vcmask 322560
    %351 = vst.msk [vmem:[#allocation11] sm:$0xf] %vm350, %v348
    // Predicated region
    $region54: #{tpu_custom_call.1} parent=1 // pred_check
      _
    $region55: #{tpu_custom_call.1} parent=1 // pred_check_branch
      %353 = sbr.rel (0) target = $region57
    $region56: #{tpu_custom_call.1} parent=1 // pred_region
      %s355 = ssub.s32 64, 64
      %356 = vsyncadd [#allocation4], %s355
      %s358 = sshll.u32 [#allocation11], 4
      %s359 = int_to_ptr.vmem [resolvable:$true] %s358
      %361 = dma.vmem_to_hbm [thread:$0]  %s359, 64, %s8, [#allocation4]
    $region57: #{tpu_custom_call.1} parent=1 // pred_fallthru
      _
    // Predicated region
    $region58: #{tpu_custom_call.1} parent=1 // pred_check
      _
    $region59: #{tpu_custom_call.1} parent=1 // pred_check_branch
      %363 = sbr.rel (0) target = $region61
    $region60: #{tpu_custom_call.1} parent=1 // pred_region
      %364 = dma.done [#allocation4], 64
    $region61: #{tpu_custom_call.1} parent=1 // pred_fallthru
      _
    %365 = vsyncpa [#allocation3], 1
    %366 = vsyncpa [#allocation6], 1
    %367 = vsyncpa [#allocation9], 1
    %368 = vsyncpa [#allocation4], 1

</llo_original>
